<compile_context>
chip_gen: v6e
topology: v6e:2x2x1
jax: 0.10.0
libtpu: 0.0.40
codegen_flags: <defaults>
</compile_context>

<pallas_src>
import jax
import jax.numpy as jnp
from jax.experimental import pallas as pl
from jax.experimental.pallas import tpu as pltpu

INPUT_DIM = 24
PADDED_INPUT_DIM = 32      # zero-padded so W1 rows / ax cols are 32-aligned
HIDDEN_DIM = 128
OUTPUT_DIM = 2
BN_EPS = 1e-5

# Weight-slab row layout (all offsets multiples of 32; bf16, 128 lanes wide):
#   [  0: 32]  W1  (24,128) zero-padded to (32,128)
#   [ 32:160]  W2  (128,128)
#   [160:288]  W3  (128, 64) zero-padded to (128,128)
#   [288:416]  W4  ( 64,  2) zero-padded to (128,128)
W_SLAB_ROWS = 416
# Param-slab row layout (f32, 128 lanes wide, zero padded):
#   rows 0/1/2: b1/s1/t1   rows 3/4/5: b2/s2/t2   rows 6/7/8: b3/s3/t3
#   row  9    : b4
P_SLAB_ROWS = 16


# ---------------------------------------------------------------------------
# Fused Pallas kernel: conv1 -> conv2 -> conv3 -> conv4 (+ ReLU/BN/log_softmax)
# ---------------------------------------------------------------------------
def _disengcn_fused_kernel(a_ref, x_ref, w_ref, p_ref, o_ref):
    bf16, f32 = jnp.bfloat16, jnp.float32

    a = a_ref[...]                       # (N, N)   bf16
    x = x_ref[...]                       # (N, 32)  bf16 (pre-padded, pre-cast)

    # Static slices into packed slabs (row offsets are tile-aligned).
    w1 = w_ref[0:32, :]                  # (32, 128)  bf16
    w2 = w_ref[32:160, :]                # (128, 128) bf16
    w3 = w_ref[160:288, :]               # (128, 128) bf16 (cols 64:128 zero)
    w4 = w_ref[288:416, :]               # (128, 128) bf16 (cols 2:128 zero)

    b1, s1, t1 = p_ref[0:1, :], p_ref[1:2, :], p_ref[2:3, :]
    b2, s2, t2 = p_ref[3:4, :], p_ref[4:5, :], p_ref[5:6, :]
    b3, s3, t3 = p_ref[6:7, :], p_ref[7:8, :], p_ref[8:9, :]
    b4 = p_ref[9:10, :]

    # ---- layer 1: (A @ X) @ W1  (F_in=24 < F_out=128 -> aggregate first) ----
    ax = jnp.dot(a, x, preferred_element_type=f32)
    h = jnp.dot(ax.astype(bf16), w1, preferred_element_type=f32) + b1
    h = jnp.maximum(h, 0.0) * s1 + t1          # ReLU then folded eval-mode BN

    # ---- layer 2: A @ (H @ W2)  (128 -> 128) ----
    hw = jnp.dot(h.astype(bf16), w2, preferred_element_type=f32)
    h = jnp.dot(a, hw.astype(bf16), preferred_element_type=f32) + b2
    h = jnp.maximum(h, 0.0) * s2 + t2

    # ---- layer 3: A @ (H @ W3)  (128 -> 64, zero-padded to 128 lanes) ----
    hw = jnp.dot(h.astype(bf16), w3, preferred_element_type=f32)
    h = jnp.dot(a, hw.astype(bf16), preferred_element_type=f32) + b3
    h = jnp.maximum(h, 0.0) * s3 + t3          # padded cols stay exactly 0

    # ---- layer 4: A @ (H @ W4)  (-> 2 logits), width-2 log_softmax ----
    hw = jnp.dot(h.astype(bf16), w4, preferred_element_type=f32)
    z = jnp.dot(a, hw.astype(bf16), preferred_element_type=f32) + b4

    c0 = z[:, 0:1]
    c1 = z[:, 1:2]
    m = jnp.maximum(c0, c1)                              # explicit 2-col VPU ops;
    lse = m + jnp.log(jnp.exp(c0 - m) + jnp.exp(c1 - m))  # no XLU reduction
    o_ref[...] = z[:, 0:2] - lse
    # Dropout (eval) == identity.


# ---------------------------------------------------------------------------
# Wrapper: whole (small) arrays live in VMEM; one fused gridless call.
# ---------------------------------------------------------------------------
@jax.jit
def disengcn_forward(a_hat_bf16, x_pad_bf16, w_slab, p_slab):
    n = a_hat_bf16.shape[0]
    vmem = pl.BlockSpec(memory_space=pltpu.MemorySpace.VMEM)
    return pl.pallas_call(
        _disengcn_fused_kernel,
        out_shape=jax.ShapeDtypeStruct((n, OUTPUT_DIM), jnp.float32),
        in_specs=[vmem, vmem, vmem, vmem],
        out_specs=vmem,
    )(a_hat_bf16, x_pad_bf16, w_slab, p_slab)


# ---------------------------------------------------------------------------
# Parameter init, BN folding + slab packing, dense GCN normalization
# ---------------------------------------------------------------------------
def glorot(key, fan_in, fan_out):
    limit = jnp.sqrt(6.0 / (fan_in + fan_out))
    return jax.random.uniform(key, (fan_in, fan_out), jnp.float32, -limit, limit)


def make_params(key):
    dims = [(INPUT_DIM, HIDDEN_DIM),
            (HIDDEN_DIM, HIDDEN_DIM),
            (HIDDEN_DIM, HIDDEN_DIM // 2),
            (HIDDEN_DIM // 2, OUTPUT_DIM)]
    keys = jax.random.split(key, len(dims))
    params = []
    for k, (fi, fo) in zip(keys, dims):
        params.append(dict(
            w=glorot(k, fi, fo),
            b=jnp.zeros((1, fo), jnp.float32),        # PyG GCNConv bias init
            gamma=jnp.ones((1, fo), jnp.float32),     # BatchNorm1d weight
            beta=jnp.zeros((1, fo), jnp.float32),     # BatchNorm1d bias
            mean=jnp.zeros((1, fo), jnp.float32),     # running_mean
            var=jnp.ones((1, fo), jnp.float32),       # running_var
        ))
    return params


def pack_params(params):
    """Fold eval-mode BN and pack all per-layer params into two VMEM slabs."""
    # Weight slab (bf16): zero-padding rows/cols keeps the math exact.
    w_slab = jnp.zeros((W_SLAB_ROWS, HIDDEN_DIM), jnp.float32)
    w_slab = w_slab.at[0:INPUT_DIM, :].set(params[0]['w'])        # (24,128)
    w_slab = w_slab.at[32:160, :].set(params[1]['w'])             # (128,128)
    w_slab = w_slab.at[160:288, 0:HIDDEN_DIM // 2].set(params[2]['w'])
    w_slab = w_slab.at[288:288 + HIDDEN_DIM // 2,
                       0:OUTPUT_DIM].set(params[3]['w'])
    w_slab = w_slab.astype(jnp.bfloat16)

    # Bias / folded-BN slab (f32): one row per vector, zero padded to 128.
    p_slab = jnp.zeros((P_SLAB_ROWS, HIDDEN_DIM), jnp.float32)
    for i, p in enumerate(params):
        fo = p['w'].shape[1]
        s = p['gamma'] * jax.lax.rsqrt(p['var'] + BN_EPS)
        t = p['beta'] - p['mean'] * s
        if i < 3:
            p_slab = p_slab.at[3 * i + 0, 0:fo].set(p['b'][0])
            p_slab = p_slab.at[3 * i + 1, 0:fo].set(s[0])
            p_slab = p_slab.at[3 * i + 2, 0:fo].set(t[0])
        else:                                          # layer 4 has no BN
            p_slab = p_slab.at[9, 0:fo].set(p['b'][0])
    return w_slab, p_slab


def gcn_norm_dense(edge_index, num_nodes):
    """Dense D^-1/2 (A + I) D^-1/2 from an undirected edge_index [2, E]."""
    src, dst = edge_index[0], edge_index[1]
    a = jnp.zeros((num_nodes, num_nodes), jnp.float32)
    a = a.at[dst, src].set(1.0)
    # Force diagonal to exactly 1 even if edge_index already has self loops
    # (matches PyG add_remaining_self_loops for unweighted graphs).
    a = jnp.maximum(a, jnp.eye(num_nodes, dtype=jnp.float32))
    deg = jnp.sum(a, axis=1)
    dinv = jnp.where(deg > 0, jax.lax.rsqrt(deg), 0.0)
    return a * dinv[:, None] * dinv[None, :]


# ---------------------------------------------------------------------------
# Pure-JAX references: (a) bf16-mirroring (same casts as kernel), (b) all-f32
# ---------------------------------------------------------------------------
def _bn(h, p):
    return (h - p['mean']) * jax.lax.rsqrt(p['var'] + BN_EPS) * p['gamma'] + p['beta']


def disengcn_reference_bf16(a_bf16, x_bf16, params):
    bf16, f32 = jnp.bfloat16, jnp.float32
    p = params[0]
    ax = jnp.dot(a_bf16, x_bf16, preferred_element_type=f32)
    h = jnp.dot(ax.astype(bf16), p['w'].astype(bf16),
                preferred_element_type=f32) + p['b']
    h = _bn(jnp.maximum(h, 0.0), p)
    for p in params[1:3]:
        hw = jnp.dot(h.astype(bf16), p['w'].astype(bf16),
                     preferred_element_type=f32)
        h = jnp.dot(a_bf16, hw.astype(bf16), preferred_element_type=f32) + p['b']
        h = _bn(jnp.maximum(h, 0.0), p)
    p = params[3]
    hw = jnp.dot(h.astype(bf16), p['w'].astype(bf16), preferred_element_type=f32)
    z = jnp.dot(a_bf16, hw.astype(bf16), preferred_element_type=f32) + p['b']
    return jax.nn.log_softmax(z, axis=1)


def disengcn_reference_f32(a_f32, x_f32, params):
    h = x_f32
    for p in params[:3]:
        h = a_f32 @ (h @ p['w']) + p['b']
        h = _bn(jnp.maximum(h, 0.0), p)
    p = params[3]
    z = a_f32 @ (h @ p['w']) + p['b']
    return jax.nn.log_softmax(z, axis=1)


# ---------------------------------------------------------------------------
if __name__ == "__main__":
    key = jax.random.PRNGKey(0)
    k_x, k_p = jax.random.split(key)

    N = 32  # number of graph nodes
    x = jax.random.normal(k_x, (N, INPUT_DIM), jnp.float32)

    # deterministic undirected ring graph (both directions, no self loops)
    src = jnp.arange(N, dtype=jnp.int32)
    dst = (src + 1) % N
    edge_index = jnp.stack([jnp.concatenate([src, dst]),
                            jnp.concatenate([dst, src])], axis=0)  # [2, 64]

    params = make_params(k_p)
    w_slab, p_slab = pack_params(params)

    # Per-graph constants, computed once outside the jitted forward.
    a_hat_f32 = gcn_norm_dense(edge_index, N)
    a_hat = a_hat_f32.astype(jnp.bfloat16)
    # Pre-pad X to 32 features and pre-cast to bf16 on the host.
    x_pad = (jnp.zeros((N, PADDED_INPUT_DIM), jnp.float32)
             .at[:, :INPUT_DIM].set(x).astype(jnp.bfloat16))

    out = disengcn_forward(a_hat, x_pad, w_slab, p_slab)
    out = jax.block_until_ready(out)

    assert out.shape == (N, OUTPUT_DIM), out.shape
    assert bool(jnp.all(jnp.isfinite(out)))
    # rows of exp(log_softmax) must sum to 1
    row_sums = jnp.sum(jnp.exp(out), axis=1)
    assert bool(jnp.allclose(row_sums, 1.0, atol=1e-5))

    # (a) fused kernel matches the bf16-mirroring pure-JAX reference tightly
    ref_bf16 = disengcn_reference_bf16(a_hat, x.astype(jnp.bfloat16), params)
    err_bf16 = float(jnp.max(jnp.abs(out - ref_bf16)))
    assert err_bf16 < 5e-3, err_bf16

    # (b) measure drift vs. an all-f32 reference (original PyTorch math)
    ref_f32 = disengcn_reference_f32(a_hat_f32, x, params)
    err_f32 = float(jnp.max(jnp.abs(out - ref_f32)))
    print(f"max|kernel - f32_ref| = {err_f32:.4e}")
    assert err_f32 < 1e-1, err_f32   # typical measured drift ~1e-2 after 4 bf16 layers

    print("KERNEL_OK")
</pallas_src>

<mosaic_0001>
module attributes {stable_mosaic.version = 11 : i64} {
  func.func @_disengcn_fused_kernel(%arg0: memref<32x32xbf16, #tpu.memory_space<vmem>>, %arg1: memref<32x32xbf16, #tpu.memory_space<vmem>>, %arg2: memref<416x128xbf16, #tpu.memory_space<vmem>>, %arg3: memref<16x128xf32, #tpu.memory_space<vmem>>, %arg4: memref<32x2xf32, #tpu.memory_space<vmem>>) attributes {dimension_semantics = [], scalar_prefetch = 0 : i64, scratch_operands = 0 : i64, tpu.core_type = #tpu.core_type<tc>} {
    %c0 = arith.constant 0 : index
    %c0_0 = arith.constant 0 : index
    %0 = vector.load %arg0[%c0, %c0_0] : memref<32x32xbf16, #tpu.memory_space<vmem>>, vector<32x32xbf16>
    %c0_1 = arith.constant 0 : index
    %c0_2 = arith.constant 0 : index
    %1 = vector.load %arg1[%c0_1, %c0_2] : memref<32x32xbf16, #tpu.memory_space<vmem>>, vector<32x32xbf16>
    %c0_3 = arith.constant 0 : index
    %c0_4 = arith.constant 0 : index
    %2 = vector.load %arg2[%c0_3, %c0_4] : memref<416x128xbf16, #tpu.memory_space<vmem>>, vector<32x128xbf16>
    %c32 = arith.constant 32 : index
    %c0_5 = arith.constant 0 : index
    %3 = vector.load %arg2[%c32, %c0_5] : memref<416x128xbf16, #tpu.memory_space<vmem>>, vector<128x128xbf16>
    %c160 = arith.constant 160 : index
    %c0_6 = arith.constant 0 : index
    %4 = vector.load %arg2[%c160, %c0_6] : memref<416x128xbf16, #tpu.memory_space<vmem>>, vector<128x128xbf16>
    %c288 = arith.constant 288 : index
    %c0_7 = arith.constant 0 : index
    %5 = vector.load %arg2[%c288, %c0_7] : memref<416x128xbf16, #tpu.memory_space<vmem>>, vector<128x128xbf16>
    %c0_8 = arith.constant 0 : index
    %c0_9 = arith.constant 0 : index
    %6 = vector.load %arg3[%c0_8, %c0_9] : memref<16x128xf32, #tpu.memory_space<vmem>>, vector<1x128xf32>
    %c1 = arith.constant 1 : index
    %c0_10 = arith.constant 0 : index
    %7 = vector.load %arg3[%c1, %c0_10] : memref<16x128xf32, #tpu.memory_space<vmem>>, vector<1x128xf32>
    %c2 = arith.constant 2 : index
    %c0_11 = arith.constant 0 : index
    %8 = vector.load %arg3[%c2, %c0_11] : memref<16x128xf32, #tpu.memory_space<vmem>>, vector<1x128xf32>
    %c3 = arith.constant 3 : index
    %c0_12 = arith.constant 0 : index
    %9 = vector.load %arg3[%c3, %c0_12] : memref<16x128xf32, #tpu.memory_space<vmem>>, vector<1x128xf32>
    %c4 = arith.constant 4 : index
    %c0_13 = arith.constant 0 : index
    %10 = vector.load %arg3[%c4, %c0_13] : memref<16x128xf32, #tpu.memory_space<vmem>>, vector<1x128xf32>
    %c5 = arith.constant 5 : index
    %c0_14 = arith.constant 0 : index
    %11 = vector.load %arg3[%c5, %c0_14] : memref<16x128xf32, #tpu.memory_space<vmem>>, vector<1x128xf32>
    %c6 = arith.constant 6 : index
    %c0_15 = arith.constant 0 : index
    %12 = vector.load %arg3[%c6, %c0_15] : memref<16x128xf32, #tpu.memory_space<vmem>>, vector<1x128xf32>
    %c7 = arith.constant 7 : index
    %c0_16 = arith.constant 0 : index
    %13 = vector.load %arg3[%c7, %c0_16] : memref<16x128xf32, #tpu.memory_space<vmem>>, vector<1x128xf32>
    %c8 = arith.constant 8 : index
    %c0_17 = arith.constant 0 : index
    %14 = vector.load %arg3[%c8, %c0_17] : memref<16x128xf32, #tpu.memory_space<vmem>>, vector<1x128xf32>
    %c9 = arith.constant 9 : index
    %c0_18 = arith.constant 0 : index
    %15 = vector.load %arg3[%c9, %c0_18] : memref<16x128xf32, #tpu.memory_space<vmem>>, vector<1x128xf32>
    %cst = arith.constant dense<0.000000e+00> : vector<32x32xf32>
    %16 = tpu.matmul %0, %1, %cst {dimension_numbers = #tpu.dot_dimension_numbers<[1], [0], [0], [1], [0, 0, 1, 1], [], []>} : vector<32x32xbf16>, vector<32x32xbf16>, vector<32x32xf32> -> vector<32x32xf32>
    %17 = arith.truncf %16 : vector<32x32xf32> to vector<32x32xbf16>
    %cst_19 = arith.constant dense<0.000000e+00> : vector<32x128xf32>
    %18 = tpu.matmul %17, %2, %cst_19 {dimension_numbers = #tpu.dot_dimension_numbers<[1], [0], [0], [1], [0, 0, 1, 1], [], []>} : vector<32x32xbf16>, vector<32x128xbf16>, vector<32x128xf32> -> vector<32x128xf32>
    %19 = vector.broadcast %6 : vector<1x128xf32> to vector<32x128xf32>
    %20 = arith.addf %18, %19 : vector<32x128xf32>
    %cst_20 = arith.constant 0.000000e+00 : f32
    %21 = vector.broadcast %cst_20 : f32 to vector<32x128xf32>
    %22 = arith.maximumf %20, %21 : vector<32x128xf32>
    %23 = vector.broadcast %7 : vector<1x128xf32> to vector<32x128xf32>
    %24 = arith.mulf %22, %23 : vector<32x128xf32>
    %25 = vector.broadcast %8 : vector<1x128xf32> to vector<32x128xf32>
    %26 = arith.addf %24, %25 : vector<32x128xf32>
    %27 = arith.truncf %26 : vector<32x128xf32> to vector<32x128xbf16>
    %cst_21 = arith.constant dense<0.000000e+00> : vector<32x128xf32>
    %28 = tpu.matmul %27, %3, %cst_21 {dimension_numbers = #tpu.dot_dimension_numbers<[1], [0], [0], [1], [0, 0, 1, 1], [], []>} : vector<32x128xbf16>, vector<128x128xbf16>, vector<32x128xf32> -> vector<32x128xf32>
    %29 = arith.truncf %28 : vector<32x128xf32> to vector<32x128xbf16>
    %cst_22 = arith.constant dense<0.000000e+00> : vector<32x128xf32>
    %30 = tpu.matmul %0, %29, %cst_22 {dimension_numbers = #tpu.dot_dimension_numbers<[1], [0], [0], [1], [0, 0, 1, 1], [], []>} : vector<32x32xbf16>, vector<32x128xbf16>, vector<32x128xf32> -> vector<32x128xf32>
    %31 = vector.broadcast %9 : vector<1x128xf32> to vector<32x128xf32>
    %32 = arith.addf %30, %31 : vector<32x128xf32>
    %cst_23 = arith.constant 0.000000e+00 : f32
    %33 = vector.broadcast %cst_23 : f32 to vector<32x128xf32>
    %34 = arith.maximumf %32, %33 : vector<32x128xf32>
    %35 = vector.broadcast %10 : vector<1x128xf32> to vector<32x128xf32>
    %36 = arith.mulf %34, %35 : vector<32x128xf32>
    %37 = vector.broadcast %11 : vector<1x128xf32> to vector<32x128xf32>
    %38 = arith.addf %36, %37 : vector<32x128xf32>
    %39 = arith.truncf %38 : vector<32x128xf32> to vector<32x128xbf16>
    %cst_24 = arith.constant dense<0.000000e+00> : vector<32x128xf32>
    %40 = tpu.matmul %39, %4, %cst_24 {dimension_numbers = #tpu.dot_dimension_numbers<[1], [0], [0], [1], [0, 0, 1, 1], [], []>} : vector<32x128xbf16>, vector<128x128xbf16>, vector<32x128xf32> -> vector<32x128xf32>
    %41 = arith.truncf %40 : vector<32x128xf32> to vector<32x128xbf16>
    %cst_25 = arith.constant dense<0.000000e+00> : vector<32x128xf32>
    %42 = tpu.matmul %0, %41, %cst_25 {dimension_numbers = #tpu.dot_dimension_numbers<[1], [0], [0], [1], [0, 0, 1, 1], [], []>} : vector<32x32xbf16>, vector<32x128xbf16>, vector<32x128xf32> -> vector<32x128xf32>
    %43 = vector.broadcast %12 : vector<1x128xf32> to vector<32x128xf32>
    %44 = arith.addf %42, %43 : vector<32x128xf32>
    %cst_26 = arith.constant 0.000000e+00 : f32
    %45 = vector.broadcast %cst_26 : f32 to vector<32x128xf32>
    %46 = arith.maximumf %44, %45 : vector<32x128xf32>
    %47 = vector.broadcast %13 : vector<1x128xf32> to vector<32x128xf32>
    %48 = arith.mulf %46, %47 : vector<32x128xf32>
    %49 = vector.broadcast %14 : vector<1x128xf32> to vector<32x128xf32>
    %50 = arith.addf %48, %49 : vector<32x128xf32>
    %51 = arith.truncf %50 : vector<32x128xf32> to vector<32x128xbf16>
    %cst_27 = arith.constant dense<0.000000e+00> : vector<32x128xf32>
    %52 = tpu.matmul %51, %5, %cst_27 {dimension_numbers = #tpu.dot_dimension_numbers<[1], [0], [0], [1], [0, 0, 1, 1], [], []>} : vector<32x128xbf16>, vector<128x128xbf16>, vector<32x128xf32> -> vector<32x128xf32>
    %53 = arith.truncf %52 : vector<32x128xf32> to vector<32x128xbf16>
    %cst_28 = arith.constant dense<0.000000e+00> : vector<32x128xf32>
    %54 = tpu.matmul %0, %53, %cst_28 {dimension_numbers = #tpu.dot_dimension_numbers<[1], [0], [0], [1], [0, 0, 1, 1], [], []>} : vector<32x32xbf16>, vector<32x128xbf16>, vector<32x128xf32> -> vector<32x128xf32>
    %55 = vector.broadcast %15 : vector<1x128xf32> to vector<32x128xf32>
    %56 = arith.addf %54, %55 : vector<32x128xf32>
    %57 = vector.extract_strided_slice %56 {offsets = [0, 0], sizes = [32, 1], strides = [1, 1]} : vector<32x128xf32> to vector<32x1xf32>
    %58 = vector.extract_strided_slice %56 {offsets = [0, 1], sizes = [32, 1], strides = [1, 1]} : vector<32x128xf32> to vector<32x1xf32>
    %59 = arith.maximumf %57, %58 : vector<32x1xf32>
    %60 = arith.subf %57, %59 : vector<32x1xf32>
    %61 = math.exp %60 : vector<32x1xf32>
    %62 = arith.subf %58, %59 : vector<32x1xf32>
    %63 = math.exp %62 : vector<32x1xf32>
    %64 = arith.addf %61, %63 : vector<32x1xf32>
    %65 = math.log %64 : vector<32x1xf32>
    %66 = arith.addf %59, %65 : vector<32x1xf32>
    %67 = vector.extract_strided_slice %56 {offsets = [0, 0], sizes = [32, 2], strides = [1, 1]} : vector<32x128xf32> to vector<32x2xf32>
    %68 = vector.broadcast %66 : vector<32x1xf32> to vector<32x2xf32>
    %69 = arith.subf %67, %68 : vector<32x2xf32>
    %c0_29 = arith.constant 0 : index
    %c0_30 = arith.constant 0 : index
    %70 = vector.load %arg4[%c0_29, %c0_30] : memref<32x2xf32, #tpu.memory_space<vmem>>, vector<32x2xf32>
    tpu.vector_store %arg4[%c0_29, %c0_30], %69 {strides = array<i32>} : memref<32x2xf32, #tpu.memory_space<vmem>>, vector<32x2xf32>,
    return
  }
}

</mosaic_0001>

<llo_original>
// kernel: disengcn_forward.1
$region0: #{disengcn_forward.1}
  #allocation0 [shape = 'u32[]', space=smem, size = 0x4, offset = 0x4, fixed_abs, tag = 'smem constant byte address 0x4 - core index']
  #allocation1 [shape = 'u32[144,128]{1,0:T(1,128)}', space=vmem, size = 0x12000, scoped, tag = 'internal scratch']
  %s0 = inlined_call_operand.hbm [shape: bf16[32,32], index: 0, kind: input, shape index: {}]
  %s1 = inlined_call_operand.hbm [shape: bf16[32,32], index: 1, kind: input, shape index: {}]
  %s2 = inlined_call_operand.hbm [shape: bf16[416,128], index: 2, kind: input, shape index: {}]
  %s3 = inlined_call_operand.hbm [shape: f32[16,128], index: 3, kind: input, shape index: {}]
  %s4 = inlined_call_operand.vmem [shape: f32[32,2], index: 4, kind: output, shape index: {}]
  %s5 = sld [smem:[#allocation0]]
  $region42: #{disengcn_forward.1} parent=0
    _
  %s7 = ssub.s32 1, %s5
  %s8 = scalar_select 0, %s7, %s5
  $region1: #{disengcn_forward.1} parent=0
    #allocation2 [shape = 'u8[8192]{0}', space=vmem, size = 0x2000, scoped, tag = 'input window, operand 0, single buffered']
    #allocation3 [shape = 's32[1]{0}', space=sflag, size = 0x4, scoped, tag = 'scoped memory for disengcn_forward.1']
    #allocation4 [shape = 'u8[8192]{0}', space=vmem, size = 0x2000, scoped, tag = 'input window, operand 1, single buffered']
    #allocation5 [shape = 's32[1]{0}', space=sflag, size = 0x4, scoped, tag = 'scoped memory for disengcn_forward.1']
    #allocation6 [shape = 'u8[106496]{0}', space=vmem, size = 0x1a000, scoped, tag = 'input window, operand 2, single buffered']
    #allocation7 [shape = 'u8[8192]{0}', space=vmem, size = 0x2000, scoped, tag = 'input window, operand 3, single buffered']
    #allocation8 [shape = 's32[1]{0}', space=sflag, size = 0x4, scoped, tag = 'scoped memory for disengcn_forward.1']
    %9 = vsyncpa [#allocation3], 0
    %10 = vsyncpa [#allocation5], 0
    %11 = vsyncpa [#allocation8], 0
    // Predicated region
    $region2: #{disengcn_forward.1} parent=1 // pred_check
      _
    $region3: #{disengcn_forward.1} parent=1 // pred_check_branch
      %13 = sbr.rel (0) target = $region5
    $region4: #{disengcn_forward.1} parent=1 // pred_region
      %s15 = ssub.s32 256, 256
      %16 = vsyncadd [#allocation3], %s15
      %s17 = sshll.u32 [#allocation2], 4
      %s18 = int_to_ptr.vmem [resolvable:$true] %s17
      %23 = dma.hbm_to_vmem [thread:$0]  %s0, 256, %s18, [#allocation3], 64, 64, 4
    $region5: #{disengcn_forward.1} parent=1 // pred_fallthru
      _
    // Predicated region
    $region6: #{disengcn_forward.1} parent=1 // pred_check
      _
    $region7: #{disengcn_forward.1} parent=1 // pred_check_branch
      %25 = sbr.rel (0) target = $region9
    $region8: #{disengcn_forward.1} parent=1 // pred_region
      %s27 = ssub.s32 256, 256
      %28 = vsyncadd [#allocation5], %s27
      %s29 = sshll.u32 [#allocation4], 4
      %s30 = int_to_ptr.vmem [resolvable:$true] %s29
      %35 = dma.hbm_to_vmem [thread:$0]  %s1, 256, %s30, [#allocation5], 64, 64, 4
    $region9: #{disengcn_forward.1} parent=1 // pred_fallthru
      _
    // Predicated region
    $region10: #{disengcn_forward.1} parent=1 // pred_check
      _
    $region11: #{disengcn_forward.1} parent=1 // pred_check_branch
      %37 = sbr.rel (0) target = $region13
    $region12: #{disengcn_forward.1} parent=1 // pred_region
      %s39 = ssub.s32 3328, 3328
      %40 = vsyncadd [#allocation5], %s39
      %s41 = sshll.u32 [#allocation6], 4
      %s42 = int_to_ptr.vmem [resolvable:$true] %s41
      %47 = dma.hbm_to_vmem [thread:$0]  %s2, 3328, %s42, [#allocation5], 64, 64, 4
    $region13: #{disengcn_forward.1} parent=1 // pred_fallthru
      _
    // Predicated region
    $region14: #{disengcn_forward.1} parent=1 // pred_check
      _
    $region15: #{disengcn_forward.1} parent=1 // pred_check_branch
      %49 = sbr.rel (0) target = $region17
    $region16: #{disengcn_forward.1} parent=1 // pred_region
      %s51 = ssub.s32 256, 256
      %52 = vsyncadd [#allocation8], %s51
      %s53 = sshll.u32 [#allocation7], 4
      %s54 = int_to_ptr.vmem [resolvable:$true] %s53
      %59 = dma.hbm_to_vmem [thread:$0]  %s3, 256, %s54, [#allocation8], 128, 128, 8
    $region17: #{disengcn_forward.1} parent=1 // pred_fallthru
      _
    // Predicated region
    $region18: #{disengcn_forward.1} parent=1 // pred_check
      _
    $region19: #{disengcn_forward.1} parent=1 // pred_check_branch
      %61 = sbr.rel (0) target = $region21
    $region20: #{disengcn_forward.1} parent=1 // pred_region
      %62 = dma.done [#allocation3], 256
    $region21: #{disengcn_forward.1} parent=1 // pred_fallthru
      _
    // Predicated region
    $region22: #{disengcn_forward.1} parent=1 // pred_check
      _
    $region23: #{disengcn_forward.1} parent=1 // pred_check_branch
      %64 = sbr.rel (0) target = $region25
    $region24: #{disengcn_forward.1} parent=1 // pred_region
      %65 = dma.done [#allocation5], 256
    $region25: #{disengcn_forward.1} parent=1 // pred_fallthru
      _
    // Predicated region
    $region26: #{disengcn_forward.1} parent=1 // pred_check
      _
    $region27: #{disengcn_forward.1} parent=1 // pred_check_branch
      %67 = sbr.rel (0) target = $region29
    $region28: #{disengcn_forward.1} parent=1 // pred_region
      %68 = dma.done [#allocation5], 3328
    $region29: #{disengcn_forward.1} parent=1 // pred_fallthru
      _
    // Predicated region
    $region30: #{disengcn_forward.1} parent=1 // pred_check
      _
    $region31: #{disengcn_forward.1} parent=1 // pred_check_branch
      %70 = sbr.rel (0) target = $region33
    $region32: #{disengcn_forward.1} parent=1 // pred_region
      %71 = dma.done [#allocation8], 256
    $region33: #{disengcn_forward.1} parent=1 // pred_fallthru
      _
    %v73 = vld [vmem:[#allocation2] sm:$0xf]
    %v74 = vld [vmem:[#allocation2 + $0x4] sm:$0xf]
    %v75 = vld [vmem:[#allocation2 + $0x8] sm:$0xf]
    %v76 = vld [vmem:[#allocation2 + $0xc] sm:$0xf]
    %v77 = vld [vmem:[#allocation4] sm:$0xf]
    %v78 = vld [vmem:[#allocation4 + $0x4] sm:$0xf]
    %v79 = vld [vmem:[#allocation4 + $0x8] sm:$0xf]
    %v80 = vld [vmem:[#allocation4 + $0xc] sm:$0xf]
    %v81 = vld [vmem:[#allocation6] sm:$0xf]
    %v82 = vld [vmem:[#allocation6 + $0x4] sm:$0xf]
    %v83 = vld [vmem:[#allocation6 + $0x8] sm:$0xf]
    %v84 = vld [vmem:[#allocation6 + $0xc] sm:$0xf]
    %v85 = vld [vmem:[#allocation6 + $0x10] sm:$0xf]
    %v86 = vld [vmem:[#allocation6 + $0x14] sm:$0xf]
    %v87 = vld [vmem:[#allocation6 + $0x18] sm:$0xf]
    %v88 = vld [vmem:[#allocation6 + $0x1c] sm:$0xf]
    %v89 = vld [vmem:[#allocation6 + $0x20] sm:$0xf]
    %v90 = vld [vmem:[#allocation6 + $0x24] sm:$0xf]
    %v91 = vld [vmem:[#allocation6 + $0x28] sm:$0xf]
    %v92 = vld [vmem:[#allocation6 + $0x2c] sm:$0xf]
    %v93 = vld [vmem:[#allocation6 + $0x30] sm:$0xf]
    %v94 = vld [vmem:[#allocation6 + $0x34] sm:$0xf]
    %v95 = vld [vmem:[#allocation6 + $0x38] sm:$0xf]
    %v96 = vld [vmem:[#allocation6 + $0x3c] sm:$0xf]
    %v97 = vld [vmem:[#allocation6 + $0x40] sm:$0xf]
    %v98 = vld [vmem:[#allocation6 + $0x44] sm:$0xf]
    %v99 = vld [vmem:[#allocation6 + $0x48] sm:$0xf]
    %v100 = vld [vmem:[#allocation6 + $0x4c] sm:$0xf]
    %v101 = vld [vmem:[#allocation6 + $0x50] sm:$0xf]
    %v102 = vld [vmem:[#allocation6 + $0x54] sm:$0xf]
    %v103 = vld [vmem:[#allocation6 + $0x58] sm:$0xf]
    %v104 = vld [vmem:[#allocation6 + $0x5c] sm:$0xf]
    %v105 = vld [vmem:[#allocation6 + $0x60] sm:$0xf]
    %v106 = vld [vmem:[#allocation6 + $0x64] sm:$0xf]
    %v107 = vld [vmem:[#allocation6 + $0x68] sm:$0xf]
    %v108 = vld [vmem:[#allocation6 + $0x6c] sm:$0xf]
    %v109 = vld [vmem:[#allocation6 + $0x70] sm:$0xf]
    %v110 = vld [vmem:[#allocation6 + $0x74] sm:$0xf]
    %v111 = vld [vmem:[#allocation6 + $0x78] sm:$0xf]
    %v112 = vld [vmem:[#allocation6 + $0x7c] sm:$0xf]
    %v113 = vld [vmem:[#allocation6 + $0x80] sm:$0xf]
    %v114 = vld [vmem:[#allocation6 + $0x84] sm:$0xf]
    %v115 = vld [vmem:[#allocation6 + $0x88] sm:$0xf]
    %v116 = vld [vmem:[#allocation6 + $0x8c] sm:$0xf]
    %v117 = vld [vmem:[#allocation6 + $0x90] sm:$0xf]
    %v118 = vld [vmem:[#allocation6 + $0x94] sm:$0xf]
    %v119 = vld [vmem:[#allocation6 + $0x98] sm:$0xf]
    %v120 = vld [vmem:[#allocation6 + $0x9c] sm:$0xf]
    %v121 = vld [vmem:[#allocation6 + $0xa0] sm:$0xf]
    %v122 = vld [vmem:[#allocation6 + $0xa4] sm:$0xf]
    %v123 = vld [vmem:[#allocation6 + $0xa8] sm:$0xf]
    %v124 = vld [vmem:[#allocation6 + $0xac] sm:$0xf]
    %v125 = vld [vmem:[#allocation6 + $0xb0] sm:$0xf]
    %v126 = vld [vmem:[#allocation6 + $0xb4] sm:$0xf]
    %v127 = vld [vmem:[#allocation6 + $0xb8] sm:$0xf]
    %v128 = vld [vmem:[#allocation6 + $0xbc] sm:$0xf]
    %v129 = vld [vmem:[#allocation6 + $0xc0] sm:$0xf]
    %v130 = vld [vmem:[#allocation6 + $0xc4] sm:$0xf]
    %v131 = vld [vmem:[#allocation6 + $0xc8] sm:$0xf]
    %v132 = vld [vmem:[#allocation6 + $0xcc] sm:$0xf]
    %v133 = vld [vmem:[#allocation7] sm:$0x1]
    %v134 = vld [vmem:[#allocation7 + $0x1] sm:$0x1]
    %v135 = vld [vmem:[#allocation7 + $0x2] sm:$0x1]
    %v136 = vld [vmem:[#allocation7 + $0x3] sm:$0x1]
    %v137 = vld [vmem:[#allocation7 + $0x4] sm:$0x1]
    %v138 = vld [vmem:[#allocation7 + $0x5] sm:$0x1]
    %v139 = vld [vmem:[#allocation7 + $0x6] sm:$0x1]
    %v140 = vld [vmem:[#allocation7 + $0x7] sm:$0x1]
    %v141 = vld [vmem:[#allocation7 + $0x8] sm:$0x1]
    %v142 = vld [vmem:[#allocation7 + $0x9] sm:$0x1]
    %v147 = vunpack.c.l.b16 %v73
    %v148 = vunpack.c.l.b16 %v74
    %v149 = vunpack.c.l.b16 %v75
    %v150 = vunpack.c.l.b16 %v76
    %v151 = vpack.c.b16 %v148, %v147
    %v152 = vpack.c.b16 %v150, %v149
    %v157 = vunpack.c.l.b16 %v77
    %v158 = vunpack.c.l.b16 %v78
    %v159 = vunpack.c.l.b16 %v79
    %v160 = vunpack.c.l.b16 %v80
    %v161 = vpack.c.b16 %v158, %v157
    %v162 = vpack.c.b16 %v160, %v159
    %vm165 = vcmask 261120
    %v167 = vsel %vm165, %v151, 0
    %v170 = vsel %vm165, %v152, 0
    %172 = vmatprep.subr.bf16.mxu0 0
    %173 = vmatpush1.bf16.msra.mxu0 0
    %174 = vmatprep.subr.bf16.mxu0 0
    %175 = vmatpush1.bf16.msra.mxu0 0
    %176 = vmatprep.subr.bf16.mxu0 0
    %177 = vmatpush1.bf16.msra.mxu0 0
    %178 = vmatprep.subr.bf16.mxu0 0
    %179 = vmatpush1.bf16.msra.mxu0 0
    %180 = vmatprep.subr.bf16.mxu0 0
    %181 = vmatpush1.bf16.msra.mxu0 0
    %182 = vmatprep.subr.bf16.mxu0 0
    %183 = vmatpush1.bf16.msra.mxu0 0
    %184 = vmatprep.subr.bf16.mxu0 0
    %185 = vmatpush1.bf16.msra.mxu0 %v162
    %186 = vmatprep.subr.bf16.mxu0 0
    %187 = vmatpush1.bf16.msra.mxu0 %v161
    %188 = vmatprep.subr.bf16.mxu0 0
    %189 = vmatpush2.bf16.msra.mxu0 0
    %190 = vmatprep.subr.bf16.mxu0 0
    %191 = vmatpush2.bf16.msra.mxu0 0
    %192 = vmatprep.subr.bf16.mxu0 0
    %193 = vmatpush2.bf16.msra.mxu0 0
    %194 = vmatprep.subr.bf16.mxu0 0
    %195 = vmatpush2.bf16.msra.mxu0 0
    %196 = vmatprep.subr.bf16.mxu0 0
    %197 = vmatpush2.bf16.msra.mxu0 0
    %198 = vmatprep.subr.bf16.mxu0 0
    %199 = vmatpush2.bf16.msra.mxu0 0
    %200 = vmatprep.subr.bf16.mxu0 0
    %201 = vmatpush2.bf16.msra.mxu0 0
    %202 = vmatprep.subr.bf16.mxu0 0
    %203 = vmatpush2.bf16.msra.mxu0 0
    %204 = vmatprep.mubr.bf16.mxu0 0
    %205 = vmatmul.mubr.bf16.gmra.mxu0 %v167
    %v206 = vpop.f32.mrf.mxu0
    %v207 = vadd.f32 0.0, %v206
    %v208 = vpop.f32.mrf.mxu0
    %v209 = vpop.f32.mrf.mxu0
    %v210 = vadd.f32 0.0, %v209
    %v211 = vpop.f32.mrf.mxu0
    %212 = vmatprep.mubr.bf16.mxu0 0
    %213 = vmatmul.mubr.bf16.gmra.mxu0 %v170
    %v214 = vpop.f32.mrf.mxu0
    %v215 = vadd.f32 0.0, %v214
    %v216 = vpop.f32.mrf.mxu0
    %v217 = vpop.f32.mrf.mxu0
    %v218 = vadd.f32 0.0, %v217
    %v219 = vpop.f32.mrf.mxu0
    %220 = vdwg.mxu0
    %v221 = vpack.c.bf16 %v210, %v207
    %v222 = vpack.c.bf16 %v218, %v215
    %v223 = vlaneseq
    %v224 = vshrl.u32 %v223, 7
    %v225 = vsub.s32 0, %v224
    %v226 = vrot.slane %v133, %v225
    %v231 = vunpack.c.l.b16 %v81
    %v232 = vunpack.c.l.b16 %v82
    %v233 = vunpack.c.l.b16 %v83
    %v234 = vunpack.c.l.b16 %v84
    %v235 = vpack.c.b16 %v232, %v231
    %v236 = vpack.c.b16 %v234, %v233
    %v240 = vsel %vm165, %v221, 0
    %v243 = vsel %vm165, %v222, 0
    %245 = vmatprep.subr.bf16.mxu0 0
    %246 = vmatpush1.bf16.msra.mxu0 0
    %247 = vmatprep.subr.bf16.mxu0 0
    %248 = vmatpush1.bf16.msra.mxu0 0
    %249 = vmatprep.subr.bf16.mxu0 0
    %250 = vmatpush1.bf16.msra.mxu0 0
    %251 = vmatprep.subr.bf16.mxu0 0
    %252 = vmatpush1.bf16.msra.mxu0 0
    %253 = vmatprep.subr.bf16.mxu0 0
    %254 = vmatpush1.bf16.msra.mxu0 0
    %255 = vmatprep.subr.bf16.mxu0 0
    %256 = vmatpush1.bf16.msra.mxu0 0
    %257 = vmatprep.subr.bf16.mxu0 0
    %258 = vmatpush1.bf16.msra.mxu0 %v236
    %259 = vmatprep.subr.bf16.mxu0 0
    %260 = vmatpush1.bf16.msra.mxu0 %v235
    %261 = vmatprep.subr.bf16.mxu0 0
    %262 = vmatpush2.bf16.msra.mxu0 0
    %263 = vmatprep.subr.bf16.mxu0 0
    %264 = vmatpush2.bf16.msra.mxu0 0
    %265 = vmatprep.subr.bf16.mxu0 0
    %266 = vmatpush2.bf16.msra.mxu0 0
    %267 = vmatprep.subr.bf16.mxu0 0
    %268 = vmatpush2.bf16.msra.mxu0 0
    %269 = vmatprep.subr.bf16.mxu0 0
    %270 = vmatpush2.bf16.msra.mxu0 0
    %271 = vmatprep.subr.bf16.mxu0 0
    %272 = vmatpush2.bf16.msra.mxu0 0
    %273 = vmatprep.subr.bf16.mxu0 0
    %274 = vmatpush2.bf16.msra.mxu0 0
    %275 = vmatprep.subr.bf16.mxu0 0
    %276 = vmatpush2.bf16.msra.mxu0 0
    %277 = vmatprep.mubr.bf16.mxu0 0
    %278 = vmatmul.mubr.bf16.gmra.mxu0 %v240
    %v279 = vpop.f32.mrf.mxu0
    %v280 = vadd.f32 %v226, %v279
    %v281 = vpop.f32.mrf.mxu0
    %v282 = vpop.f32.mrf.mxu0
    %v283 = vadd.f32 %v226, %v282
    %v284 = vpop.f32.mrf.mxu0
    %285 = vmatprep.mubr.bf16.mxu0 0
    %286 = vmatmul.mubr.bf16.gmra.mxu0 %v243
    %v287 = vpop.f32.mrf.mxu0
    %v288 = vadd.f32 %v226, %v287
    %v289 = vpop.f32.mrf.mxu0
    %v290 = vpop.f32.mrf.mxu0
    %v291 = vadd.f32 %v226, %v290
    %v292 = vpop.f32.mrf.mxu0
    %293 = vdwg.mxu0
    %v294 = vmax.f32 %v280, 0.0
    %v295 = vmax.f32 %v283, 0.0
    %v296 = vmax.f32 %v288, 0.0
    %v297 = vmax.f32 %v291, 0.0
    %v298 = vlaneseq
    %v299 = vshrl.u32 %v298, 7
    %v300 = vsub.s32 0, %v299
    %v301 = vrot.slane %v134, %v300
    %v302 = vmul.f32 %v294, %v301
    %v303 = vmul.f32 %v295, %v301
    %v304 = vmul.f32 %v296, %v301
    %v305 = vmul.f32 %v297, %v301
    %v306 = vlaneseq
    %v307 = vshrl.u32 %v306, 7
    %v308 = vsub.s32 0, %v307
    %v309 = vrot.slane %v135, %v308
    %v310 = vadd.f32 %v302, %v309
    %v311 = vadd.f32 %v303, %v309
    %v312 = vadd.f32 %v304, %v309
    %v313 = vadd.f32 %v305, %v309
    %v314 = vpack.c.bf16 %v311, %v310
    %v315 = vpack.c.bf16 %v313, %v312
    %v332 = vunpack.c.l.b16 %v85
    %v333 = vunpack.c.l.b16 %v86
    %v334 = vunpack.c.l.b16 %v87
    %v335 = vunpack.c.l.b16 %v88
    %v336 = vunpack.c.l.b16 %v89
    %v337 = vunpack.c.l.b16 %v90
    %v338 = vunpack.c.l.b16 %v91
    %v339 = vunpack.c.l.b16 %v92
    %v340 = vunpack.c.l.b16 %v93
    %v341 = vunpack.c.l.b16 %v94
    %v342 = vunpack.c.l.b16 %v95
    %v343 = vunpack.c.l.b16 %v96
    %v344 = vunpack.c.l.b16 %v97
    %v345 = vunpack.c.l.b16 %v98
    %v346 = vunpack.c.l.b16 %v99
    %v347 = vunpack.c.l.b16 %v100
    %v348 = vpack.c.b16 %v333, %v332
    %v349 = vpack.c.b16 %v335, %v334
    %v350 = vpack.c.b16 %v337, %v336
    %v351 = vpack.c.b16 %v339, %v338
    %v352 = vpack.c.b16 %v341, %v340
    %v353 = vpack.c.b16 %v343, %v342
    %v354 = vpack.c.b16 %v345, %v344
    %v355 = vpack.c.b16 %v347, %v346
    %364 = vmatprep.subr.bf16.mxu0 0
    %365 = vmatpush1.bf16.msra.mxu0 %v355
    %366 = vmatprep.subr.bf16.mxu0 0
    %367 = vmatpush1.bf16.msra.mxu0 %v354
    %368 = vmatprep.subr.bf16.mxu0 0
    %369 = vmatpush1.bf16.msra.mxu0 %v353
    %370 = vmatprep.subr.bf16.mxu0 0
    %371 = vmatpush1.bf16.msra.mxu0 %v352
    %372 = vmatprep.subr.bf16.mxu0 0
    %373 = vmatpush1.bf16.msra.mxu0 %v351
    %374 = vmatprep.subr.bf16.mxu0 0
    %375 = vmatpush1.bf16.msra.mxu0 %v350
    %376 = vmatprep.subr.bf16.mxu0 0
    %377 = vmatpush1.bf16.msra.mxu0 %v349
    %378 = vmatprep.subr.bf16.mxu0 0
    %379 = vmatpush1.bf16.msra.mxu0 %v348
    %380 = vmatprep.subr.bf16.mxu0 0
    %381 = vmatpush2.bf16.msra.mxu0 0
    %382 = vmatprep.subr.bf16.mxu0 0
    %383 = vmatpush2.bf16.msra.mxu0 0
    %384 = vmatprep.subr.bf16.mxu0 0
    %385 = vmatpush2.bf16.msra.mxu0 0
    %386 = vmatprep.subr.bf16.mxu0 0
    %387 = vmatpush2.bf16.msra.mxu0 0
    %388 = vmatprep.subr.bf16.mxu0 0
    %389 = vmatpush2.bf16.msra.mxu0 0
    %390 = vmatprep.subr.bf16.mxu0 0
    %391 = vmatpush2.bf16.msra.mxu0 0
    %392 = vmatprep.subr.bf16.mxu0 0
    %393 = vmatpush2.bf16.msra.mxu0 0
    %394 = vmatprep.subr.bf16.mxu0 0
    %395 = vmatpush2.bf16.msra.mxu0 0
    %396 = vmatprep.mubr.bf16.mxu0 0
    %397 = vmatmul.mubr.bf16.gmra.mxu0 %v314
    %v398 = vpop.f32.mrf.mxu0
    %v399 = vadd.f32 0.0, %v398
    %v400 = vpop.f32.mrf.mxu0
    %v401 = vpop.f32.mrf.mxu0
    %v402 = vadd.f32 0.0, %v401
    %v403 = vpop.f32.mrf.mxu0
    %404 = vmatprep.mubr.bf16.mxu0 0
    %405 = vmatmul.mubr.bf16.gmra.mxu0 %v315
    %v406 = vpop.f32.mrf.mxu0
    %v407 = vadd.f32 0.0, %v406
    %v408 = vpop.f32.mrf.mxu0
    %v409 = vpop.f32.mrf.mxu0
    %v410 = vadd.f32 0.0, %v409
    %v411 = vpop.f32.mrf.mxu0
    %412 = vdwg.mxu0
    %v413 = vpack.c.bf16 %v402, %v399
    %v414 = vpack.c.bf16 %v410, %v407
    %v415 = vlaneseq
    %v416 = vshrl.u32 %v415, 7
    %v417 = vsub.s32 0, %v416
    %v418 = vrot.slane %v136, %v417
    %419 = vmatprep.subr.bf16.mxu0 0
    %420 = vmatpush1.bf16.msra.mxu0 0
    %421 = vmatprep.subr.bf16.mxu0 0
    %422 = vmatpush1.bf16.msra.mxu0 0
    %423 = vmatprep.subr.bf16.mxu0 0
    %424 = vmatpush1.bf16.msra.mxu0 0
    %425 = vmatprep.subr.bf16.mxu0 0
    %426 = vmatpush1.bf16.msra.mxu0 0
    %427 = vmatprep.subr.bf16.mxu0 0
    %428 = vmatpush1.bf16.msra.mxu0 0
    %429 = vmatprep.subr.bf16.mxu0 0
    %430 = vmatpush1.bf16.msra.mxu0 0
    %431 = vmatprep.subr.bf16.mxu0 0
    %432 = vmatpush1.bf16.msra.mxu0 %v414
    %433 = vmatprep.subr.bf16.mxu0 0
    %434 = vmatpush1.bf16.msra.mxu0 %v413
    %435 = vmatprep.subr.bf16.mxu0 0
    %436 = vmatpush2.bf16.msra.mxu0 0
    %437 = vmatprep.subr.bf16.mxu0 0
    %438 = vmatpush2.bf16.msra.mxu0 0
    %439 = vmatprep.subr.bf16.mxu0 0
    %440 = vmatpush2.bf16.msra.mxu0 0
    %441 = vmatprep.subr.bf16.mxu0 0
    %442 = vmatpush2.bf16.msra.mxu0 0
    %443 = vmatprep.subr.bf16.mxu0 0
    %444 = vmatpush2.bf16.msra.mxu0 0
    %445 = vmatprep.subr.bf16.mxu0 0
    %446 = vmatpush2.bf16.msra.mxu0 0
    %447 = vmatprep.subr.bf16.mxu0 0
    %448 = vmatpush2.bf16.msra.mxu0 0
    %449 = vmatprep.subr.bf16.mxu0 0
    %450 = vmatpush2.bf16.msra.mxu0 0
    %451 = vmatprep.mubr.bf16.mxu0 0
    %452 = vmatmul.mubr.bf16.gmra.mxu0 %v167
    %v453 = vpop.f32.mrf.mxu0
    %v454 = vadd.f32 %v418, %v453
    %v455 = vpop.f32.mrf.mxu0
    %v456 = vpop.f32.mrf.mxu0
    %v457 = vadd.f32 %v418, %v456
    %v458 = vpop.f32.mrf.mxu0
    %459 = vmatprep.mubr.bf16.mxu0 0
    %460 = vmatmul.mubr.bf16.gmra.mxu0 %v170
    %v461 = vpop.f32.mrf.mxu0
    %v462 = vadd.f32 %v418, %v461
    %v463 = vpop.f32.mrf.mxu0
    %v464 = vpop.f32.mrf.mxu0
    %v465 = vadd.f32 %v418, %v464
    %v466 = vpop.f32.mrf.mxu0
    %467 = vdwg.mxu0
    %v468 = vmax.f32 %v454, 0.0
    %v469 = vmax.f32 %v457, 0.0
    %v470 = vmax.f32 %v462, 0.0
    %v471 = vmax.f32 %v465, 0.0
    %v472 = vlaneseq
    %v473 = vshrl.u32 %v472, 7
    %v474 = vsub.s32 0, %v473
    %v475 = vrot.slane %v137, %v474
    %v476 = vmul.f32 %v468, %v475
    %v477 = vmul.f32 %v469, %v475
    %v478 = vmul.f32 %v470, %v475
    %v479 = vmul.f32 %v471, %v475
    %v480 = vlaneseq
    %v481 = vshrl.u32 %v480, 7
    %v482 = vsub.s32 0, %v481
    %v483 = vrot.slane %v138, %v482
    %v484 = vadd.f32 %v476, %v483
    %v485 = vadd.f32 %v477, %v483
    %v486 = vadd.f32 %v478, %v483
    %v487 = vadd.f32 %v479, %v483
    %v488 = vpack.c.bf16 %v485, %v484
    %v489 = vpack.c.bf16 %v487, %v486
    %v506 = vunpack.c.l.b16 %v101
    %v507 = vunpack.c.l.b16 %v102
    %v508 = vunpack.c.l.b16 %v103
    %v509 = vunpack.c.l.b16 %v104
    %v510 = vunpack.c.l.b16 %v105
    %v511 = vunpack.c.l.b16 %v106
    %v512 = vunpack.c.l.b16 %v107
    %v513 = vunpack.c.l.b16 %v108
    %v514 = vunpack.c.l.b16 %v109
    %v515 = vunpack.c.l.b16 %v110
    %v516 = vunpack.c.l.b16 %v111
    %v517 = vunpack.c.l.b16 %v112
    %v518 = vunpack.c.l.b16 %v113
    %v519 = vunpack.c.l.b16 %v114
    %v520 = vunpack.c.l.b16 %v115
    %v521 = vunpack.c.l.b16 %v116
    %v522 = vpack.c.b16 %v507, %v506
    %v523 = vpack.c.b16 %v509, %v508
    %v524 = vpack.c.b16 %v511, %v510
    %v525 = vpack.c.b16 %v513, %v512
    %v526 = vpack.c.b16 %v515, %v514
    %v527 = vpack.c.b16 %v517, %v516
    %v528 = vpack.c.b16 %v519, %v518
    %v529 = vpack.c.b16 %v521, %v520
    %538 = vmatprep.subr.bf16.mxu0 0
    %539 = vmatpush1.bf16.msra.mxu0 %v529
    %540 = vmatprep.subr.bf16.mxu0 0
    %541 = vmatpush1.bf16.msra.mxu0 %v528
    %542 = vmatprep.subr.bf16.mxu0 0
    %543 = vmatpush1.bf16.msra.mxu0 %v527
    %544 = vmatprep.subr.bf16.mxu0 0
    %545 = vmatpush1.bf16.msra.mxu0 %v526
    %546 = vmatprep.subr.bf16.mxu0 0
    %547 = vmatpush1.bf16.msra.mxu0 %v525
    %548 = vmatprep.subr.bf16.mxu0 0
    %549 = vmatpush1.bf16.msra.mxu0 %v524
    %550 = vmatprep.subr.bf16.mxu0 0
    %551 = vmatpush1.bf16.msra.mxu0 %v523
    %552 = vmatprep.subr.bf16.mxu0 0
    %553 = vmatpush1.bf16.msra.mxu0 %v522
    %554 = vmatprep.subr.bf16.mxu0 0
    %555 = vmatpush2.bf16.msra.mxu0 0
    %556 = vmatprep.subr.bf16.mxu0 0
    %557 = vmatpush2.bf16.msra.mxu0 0
    %558 = vmatprep.subr.bf16.mxu0 0
    %559 = vmatpush2.bf16.msra.mxu0 0
    %560 = vmatprep.subr.bf16.mxu0 0
    %561 = vmatpush2.bf16.msra.mxu0 0
    %562 = vmatprep.subr.bf16.mxu0 0
    %563 = vmatpush2.bf16.msra.mxu0 0
    %564 = vmatprep.subr.bf16.mxu0 0
    %565 = vmatpush2.bf16.msra.mxu0 0
    %566 = vmatprep.subr.bf16.mxu0 0
    %567 = vmatpush2.bf16.msra.mxu0 0
    %568 = vmatprep.subr.bf16.mxu0 0
    %569 = vmatpush2.bf16.msra.mxu0 0
    %570 = vmatprep.mubr.bf16.mxu0 0
    %571 = vmatmul.mubr.bf16.gmra.mxu0 %v488
    %v572 = vpop.f32.mrf.mxu0
    %v573 = vadd.f32 0.0, %v572
    %v574 = vpop.f32.mrf.mxu0
    %v575 = vpop.f32.mrf.mxu0
    %v576 = vadd.f32 0.0, %v575
    %v577 = vpop.f32.mrf.mxu0
    %578 = vmatprep.mubr.bf16.mxu0 0
    %579 = vmatmul.mubr.bf16.gmra.mxu0 %v489
    %v580 = vpop.f32.mrf.mxu0
    %v581 = vadd.f32 0.0, %v580
    %v582 = vpop.f32.mrf.mxu0
    %v583 = vpop.f32.mrf.mxu0
    %v584 = vadd.f32 0.0, %v583
    %v585 = vpop.f32.mrf.mxu0
    %586 = vdwg.mxu0
    %v587 = vpack.c.bf16 %v576, %v573
    %v588 = vpack.c.bf16 %v584, %v581
    %v589 = vlaneseq
    %v590 = vshrl.u32 %v589, 7
    %v591 = vsub.s32 0, %v590
    %v592 = vrot.slane %v139, %v591
    %593 = vmatprep.subr.bf16.mxu0 0
    %594 = vmatpush1.bf16.msra.mxu0 0
    %595 = vmatprep.subr.bf16.mxu0 0
    %596 = vmatpush1.bf16.msra.mxu0 0
    %597 = vmatprep.subr.bf16.mxu0 0
    %598 = vmatpush1.bf16.msra.mxu0 0
    %599 = vmatprep.subr.bf16.mxu0 0
    %600 = vmatpush1.bf16.msra.mxu0 0
    %601 = vmatprep.subr.bf16.mxu0 0
    %602 = vmatpush1.bf16.msra.mxu0 0
    %603 = vmatprep.subr.bf16.mxu0 0
    %604 = vmatpush1.bf16.msra.mxu0 0
    %605 = vmatprep.subr.bf16.mxu0 0
    %606 = vmatpush1.bf16.msra.mxu0 %v588
    %607 = vmatprep.subr.bf16.mxu0 0
    %608 = vmatpush1.bf16.msra.mxu0 %v587
    %609 = vmatprep.subr.bf16.mxu0 0
    %610 = vmatpush2.bf16.msra.mxu0 0
    %611 = vmatprep.subr.bf16.mxu0 0
    %612 = vmatpush2.bf16.msra.mxu0 0
    %613 = vmatprep.subr.bf16.mxu0 0
    %614 = vmatpush2.bf16.msra.mxu0 0
    %615 = vmatprep.subr.bf16.mxu0 0
    %616 = vmatpush2.bf16.msra.mxu0 0
    %617 = vmatprep.subr.bf16.mxu0 0
    %618 = vmatpush2.bf16.msra.mxu0 0
    %619 = vmatprep.subr.bf16.mxu0 0
    %620 = vmatpush2.bf16.msra.mxu0 0
    %621 = vmatprep.subr.bf16.mxu0 0
    %622 = vmatpush2.bf16.msra.mxu0 0
    %623 = vmatprep.subr.bf16.mxu0 0
    %624 = vmatpush2.bf16.msra.mxu0 0
    %625 = vmatprep.mubr.bf16.mxu0 0
    %626 = vmatmul.mubr.bf16.gmra.mxu0 %v167
    %v627 = vpop.f32.mrf.mxu0
    %v628 = vadd.f32 %v592, %v627
    %v629 = vpop.f32.mrf.mxu0
    %v630 = vpop.f32.mrf.mxu0
    %v631 = vadd.f32 %v592, %v630
    %v632 = vpop.f32.mrf.mxu0
    %633 = vmatprep.mubr.bf16.mxu0 0
    %634 = vmatmul.mubr.bf16.gmra.mxu0 %v170
    %v635 = vpop.f32.mrf.mxu0
    %v636 = vadd.f32 %v592, %v635
    %v637 = vpop.f32.mrf.mxu0
    %v638 = vpop.f32.mrf.mxu0
    %v639 = vadd.f32 %v592, %v638
    %v640 = vpop.f32.mrf.mxu0
    %641 = vdwg.mxu0
    %v642 = vmax.f32 %v628, 0.0
    %v643 = vmax.f32 %v631, 0.0
    %v644 = vmax.f32 %v636, 0.0
    %v645 = vmax.f32 %v639, 0.0
    %v646 = vlaneseq
    %v647 = vshrl.u32 %v646, 7
    %v648 = vsub.s32 0, %v647
    %v649 = vrot.slane %v140, %v648
    %v650 = vmul.f32 %v642, %v649
    %v651 = vmul.f32 %v643, %v649
    %v652 = vmul.f32 %v644, %v649
    %v653 = vmul.f32 %v645, %v649
    %v654 = vlaneseq
    %v655 = vshrl.u32 %v654, 7
    %v656 = vsub.s32 0, %v655
    %v657 = vrot.slane %v141, %v656
    %v658 = vadd.f32 %v650, %v657
    %v659 = vadd.f32 %v651, %v657
    %v660 = vadd.f32 %v652, %v657
    %v661 = vadd.f32 %v653, %v657
    %v662 = vpack.c.bf16 %v659, %v658
    %v663 = vpack.c.bf16 %v661, %v660
    %v680 = vunpack.c.l.b16 %v117
    %v681 = vunpack.c.l.b16 %v118
    %v682 = vunpack.c.l.b16 %v119
    %v683 = vunpack.c.l.b16 %v120
    %v684 = vunpack.c.l.b16 %v121
    %v685 = vunpack.c.l.b16 %v122
    %v686 = vunpack.c.l.b16 %v123
    %v687 = vunpack.c.l.b16 %v124
    %v688 = vunpack.c.l.b16 %v125
    %v689 = vunpack.c.l.b16 %v126
    %v690 = vunpack.c.l.b16 %v127
    %v691 = vunpack.c.l.b16 %v128
    %v692 = vunpack.c.l.b16 %v129
    %v693 = vunpack.c.l.b16 %v130
    %v694 = vunpack.c.l.b16 %v131
    %v695 = vunpack.c.l.b16 %v132
    %v696 = vpack.c.b16 %v681, %v680
    %v697 = vpack.c.b16 %v683, %v682
    %v698 = vpack.c.b16 %v685, %v684
    %v699 = vpack.c.b16 %v687, %v686
    %v700 = vpack.c.b16 %v689, %v688
    %v701 = vpack.c.b16 %v691, %v690
    %v702 = vpack.c.b16 %v693, %v692
    %v703 = vpack.c.b16 %v695, %v694
    %712 = vmatprep.subr.bf16.mxu0 0
    %713 = vmatpush1.bf16.msra.mxu0 %v703
    %714 = vmatprep.subr.bf16.mxu0 0
    %715 = vmatpush1.bf16.msra.mxu0 %v702
    %716 = vmatprep.subr.bf16.mxu0 0
    %717 = vmatpush1.bf16.msra.mxu0 %v701
    %718 = vmatprep.subr.bf16.mxu0 0
    %719 = vmatpush1.bf16.msra.mxu0 %v700
    %720 = vmatprep.subr.bf16.mxu0 0
    %721 = vmatpush1.bf16.msra.mxu0 %v699
    %722 = vmatprep.subr.bf16.mxu0 0
    %723 = vmatpush1.bf16.msra.mxu0 %v698
    %724 = vmatprep.subr.bf16.mxu0 0
    %725 = vmatpush1.bf16.msra.mxu0 %v697
    %726 = vmatprep.subr.bf16.mxu0 0
    %727 = vmatpush1.bf16.msra.mxu0 %v696
    %728 = vmatprep.subr.bf16.mxu0 0
    %729 = vmatpush2.bf16.msra.mxu0 0
    %730 = vmatprep.subr.bf16.mxu0 0
    %731 = vmatpush2.bf16.msra.mxu0 0
    %732 = vmatprep.subr.bf16.mxu0 0
    %733 = vmatpush2.bf16.msra.mxu0 0
    %734 = vmatprep.subr.bf16.mxu0 0
    %735 = vmatpush2.bf16.msra.mxu0 0
    %736 = vmatprep.subr.bf16.mxu0 0
    %737 = vmatpush2.bf16.msra.mxu0 0
    %738 = vmatprep.subr.bf16.mxu0 0
    %739 = vmatpush2.bf16.msra.mxu0 0
    %740 = vmatprep.subr.bf16.mxu0 0
    %741 = vmatpush2.bf16.msra.mxu0 0
    %742 = vmatprep.subr.bf16.mxu0 0
    %743 = vmatpush2.bf16.msra.mxu0 0
    %744 = vmatprep.mubr.bf16.mxu0 0
    %745 = vmatmul.mubr.bf16.gmra.mxu0 %v662
    %v746 = vpop.f32.mrf.mxu0
    %v747 = vadd.f32 0.0, %v746
    %v748 = vpop.f32.mrf.mxu0
    %v749 = vpop.f32.mrf.mxu0
    %v750 = vadd.f32 0.0, %v749
    %v751 = vpop.f32.mrf.mxu0
    %752 = vmatprep.mubr.bf16.mxu0 0
    %753 = vmatmul.mubr.bf16.gmra.mxu0 %v663
    %v754 = vpop.f32.mrf.mxu0
    %v755 = vadd.f32 0.0, %v754
    %v756 = vpop.f32.mrf.mxu0
    %v757 = vpop.f32.mrf.mxu0
    %v758 = vadd.f32 0.0, %v757
    %v759 = vpop.f32.mrf.mxu0
    %760 = vdwg.mxu0
    %v761 = vpack.c.bf16 %v750, %v747
    %v762 = vpack.c.bf16 %v758, %v755
    %v763 = vlaneseq
    %v764 = vshrl.u32 %v763, 7
    %v765 = vsub.s32 0, %v764
    %v766 = vrot.slane %v142, %v765
    %767 = vmatprep.subr.bf16.mxu0 0
    %768 = vmatpush1.bf16.msra.mxu0 0
    %769 = vmatprep.subr.bf16.mxu0 0
    %770 = vmatpush1.bf16.msra.mxu0 0
    %771 = vmatprep.subr.bf16.mxu0 0
    %772 = vmatpush1.bf16.msra.mxu0 0
    %773 = vmatprep.subr.bf16.mxu0 0
    %774 = vmatpush1.bf16.msra.mxu0 0
    %775 = vmatprep.subr.bf16.mxu0 0
    %776 = vmatpush1.bf16.msra.mxu0 0
    %777 = vmatprep.subr.bf16.mxu0 0
    %778 = vmatpush1.bf16.msra.mxu0 0
    %779 = vmatprep.subr.bf16.mxu0 0
    %780 = vmatpush1.bf16.msra.mxu0 %v762
    %781 = vmatprep.subr.bf16.mxu0 0
    %782 = vmatpush1.bf16.msra.mxu0 %v761
    %783 = vmatprep.subr.bf16.mxu0 0
    %784 = vmatpush2.bf16.msra.mxu0 0
    %785 = vmatprep.subr.bf16.mxu0 0
    %786 = vmatpush2.bf16.msra.mxu0 0
    %787 = vmatprep.subr.bf16.mxu0 0
    %788 = vmatpush2.bf16.msra.mxu0 0
    %789 = vmatprep.subr.bf16.mxu0 0
    %790 = vmatpush2.bf16.msra.mxu0 0
    %791 = vmatprep.subr.bf16.mxu0 0
    %792 = vmatpush2.bf16.msra.mxu0 0
    %793 = vmatprep.subr.bf16.mxu0 0
    %794 = vmatpush2.bf16.msra.mxu0 0
    %795 = vmatprep.subr.bf16.mxu0 0
    %796 = vmatpush2.bf16.msra.mxu0 0
    %797 = vmatprep.subr.bf16.mxu0 0
    %798 = vmatpush2.bf16.msra.mxu0 0
    %799 = vmatprep.mubr.bf16.mxu0 0
    %800 = vmatmul.mubr.bf16.gmra.mxu0 %v167
    %v801 = vpop.f32.mrf.mxu0
    %v802 = vadd.f32 %v766, %v801
    %v803 = vpop.f32.mrf.mxu0
    %v804 = vpop.f32.mrf.mxu0
    %v805 = vadd.f32 %v766, %v804
    %v806 = vpop.f32.mrf.mxu0
    %807 = vmatprep.mubr.bf16.mxu0 0
    %808 = vmatmul.mubr.bf16.gmra.mxu0 %v170
    %v809 = vpop.f32.mrf.mxu0
    %v810 = vadd.f32 %v766, %v809
    %v811 = vpop.f32.mrf.mxu0
    %v812 = vpop.f32.mrf.mxu0
    %v813 = vadd.f32 %v766, %v812
    %v814 = vpop.f32.mrf.mxu0
    %815 = vdwg.mxu0
    %820 = vrot.lane.b32.xlu0 %v802, 127
    %v821 = vpop.permute.xlu0 %820
    %822 = vrot.lane.b32.xlu0 %v805, 127
    %v823 = vpop.permute.xlu0 %822
    %824 = vrot.lane.b32.xlu0 %v810, 127
    %v825 = vpop.permute.xlu0 %824
    %826 = vrot.lane.b32.xlu0 %v813, 127
    %v827 = vpop.permute.xlu0 %826
    %v832 = vmax.f32 %v802, %v821
    %v833 = vmax.f32 %v805, %v823
    %v834 = vmax.f32 %v810, %v825
    %v835 = vmax.f32 %v813, %v827
    %v836 = vsub.f32 %v802, %v832
    %v837 = vsub.f32 %v805, %v833
    %v838 = vsub.f32 %v810, %v834
    %v839 = vsub.f32 %v813, %v835
    %v840 = vmul.f32 %v836, 1.442695
    %v841 = vpow.pop %v840
    %v842 = vmul.f32 %v837, 1.442695
    %v843 = vpow.pop %v842
    %v844 = vmul.f32 %v838, 1.442695
    %v845 = vpow.pop %v844
    %v846 = vmul.f32 %v839, 1.442695
    %v847 = vpow.pop %v846
    %852 = vrot.lane.b32.xlu0 %v832, 1
    %v853 = vpop.permute.xlu0 %852
    %854 = vrot.lane.b32.xlu0 %v833, 1
    %v855 = vpop.permute.xlu0 %854
    %856 = vrot.lane.b32.xlu0 %v834, 1
    %v857 = vpop.permute.xlu0 %856
    %858 = vrot.lane.b32.xlu0 %v835, 1
    %v859 = vpop.permute.xlu0 %858
    %v864 = vsub.f32 %v802, %v853
    %v865 = vsub.f32 %v805, %v855
    %v866 = vsub.f32 %v810, %v857
    %v867 = vsub.f32 %v813, %v859
    %v868 = vmul.f32 %v864, 1.442695
    %v869 = vpow.pop %v868
    %v870 = vmul.f32 %v865, 1.442695
    %v871 = vpow.pop %v870
    %v872 = vmul.f32 %v866, 1.442695
    %v873 = vpow.pop %v872
    %v874 = vmul.f32 %v867, 1.442695
    %v875 = vpow.pop %v874
    %880 = vrot.lane.b32.xlu0 %v869, 127
    %v881 = vpop.permute.xlu0 %880
    %882 = vrot.lane.b32.xlu0 %v871, 127
    %v883 = vpop.permute.xlu0 %882
    %884 = vrot.lane.b32.xlu0 %v873, 127
    %v885 = vpop.permute.xlu0 %884
    %886 = vrot.lane.b32.xlu0 %v875, 127
    %v887 = vpop.permute.xlu0 %886
    %v892 = vadd.f32 %v841, %v881
    %v893 = vadd.f32 %v843, %v883
    %v894 = vadd.f32 %v845, %v885
    %v895 = vadd.f32 %v847, %v887
    %v896 = vlog2.pop %v892
    %v897 = vmul.f32 %v896, 0.6931472
    %v898 = vlog2.pop %v893
    %v899 = vmul.f32 %v898, 0.6931472
    %v900 = vlog2.pop %v894
    %v901 = vmul.f32 %v900, 0.6931472
    %v902 = vlog2.pop %v895
    %v903 = vmul.f32 %v902, 0.6931472
    %v904 = vadd.f32 %v832, %v897
    %v905 = vadd.f32 %v833, %v899
    %v906 = vadd.f32 %v834, %v901
    %v907 = vadd.f32 %v835, %v903
    %909 = vset.pattern.permute.xlu0 0
    %910 = vperm.xlu0 %909, %v904
    %v911 = vpop.permute.xlu0 %910
    %914 = vset.pattern.permute.xlu0 0
    %915 = vperm.xlu0 %914, %v905
    %v916 = vpop.permute.xlu0 %915
    %919 = vset.pattern.permute.xlu0 0
    %920 = vperm.xlu0 %919, %v906
    %v921 = vpop.permute.xlu0 %920
    %924 = vset.pattern.permute.xlu0 0
    %925 = vperm.xlu0 %924, %v907
    %v926 = vpop.permute.xlu0 %925
    %v928 = vsub.f32 %v802, %v911
    %v929 = vsub.f32 %v805, %v916
    %v930 = vsub.f32 %v810, %v921
    %v931 = vsub.f32 %v813, %v926
    %vm932 = vcmask 15360
    %933 = vst.msk [vmem:[%s4] sm:$0xff] %vm932, %v928
    %934 = vst.msk [vmem:[%s4 + $0x8] sm:$0xff] %vm932, %v929
    %935 = vst.msk [vmem:[%s4 + $0x10] sm:$0xff] %vm932, %v930
    %936 = vst.msk [vmem:[%s4 + $0x18] sm:$0xff] %vm932, %v931
    // Predicated region
    $region34: #{disengcn_forward.1} parent=1 // pred_check
      _
    $region35: #{disengcn_forward.1} parent=1 // pred_check_branch
      %938 = sbr.rel (0) target = $region37
    $region36: #{disengcn_forward.1} parent=1 // pred_region
      _
    $region37: #{disengcn_forward.1} parent=1 // pred_fallthru
      _
    // Predicated region
    $region38: #{disengcn_forward.1} parent=1 // pred_check
      _
    $region39: #{disengcn_forward.1} parent=1 // pred_check_branch
      %940 = sbr.rel (0) target = $region41
    $region40: #{disengcn_forward.1} parent=1 // pred_region
      _
    $region41: #{disengcn_forward.1} parent=1 // pred_fallthru
      _
    %941 = vsyncpa [#allocation3], 1
    %942 = vsyncpa [#allocation5], 1
    %943 = vsyncpa [#allocation8], 1

</llo_original>
